<compile_context>
chip_gen: v7x
topology: tpu7x:2x2x1
jax: 0.10.0
libtpu: 0.0.40
codegen_flags: <defaults>
</compile_context>

<pallas_src>
import functools

import jax
import jax.numpy as jnp
import numpy as np
from jax.experimental import pallas as pl
from jax.experimental.pallas import tpu as pltpu


def _mlp_kernel(x_ref, w1_ref, b1_ref, w2_ref, b2_ref, w3_ref, b3_ref,
                o_ref, *scratch):
    # If no scratch was allocated, the f32 output block itself is the
    # accumulator (its block index is constant over the k axis -> resident).
    acc_ref = scratch[0] if scratch else o_ref
    k = pl.program_id(1)

    @pl.when(k == 0)
    def _():
        acc_ref[...] = jnp.zeros_like(acc_ref)

    # fc1 partial product over the K (flownet-feature) tiles.
    acc_ref[...] += jnp.dot(x_ref[...], w1_ref[...],
                            preferred_element_type=jnp.float32)

    @pl.when(k == pl.num_programs(1) - 1)
    def _():
        # hidden = relu(fc1(x))
        h = jnp.maximum(acc_ref[...].astype(jnp.float32)
                        + b1_ref[...].astype(jnp.float32), 0.0)
        # hidden = relu(fc2(hidden))
        h = jnp.maximum(
            jnp.dot(h.astype(w2_ref.dtype), w2_ref[...],
                    preferred_element_type=jnp.float32)
            + b2_ref[...].astype(jnp.float32), 0.0)
        # out = fc3(hidden)   (no activation, matching the module)
        h = (jnp.dot(h.astype(w3_ref.dtype), w3_ref[...],
                     preferred_element_type=jnp.float32)
             + b3_ref[...].astype(jnp.float32))
        o_ref[...] = h.astype(o_ref.dtype)


def _pick_tile(dim, target, align):
    """Largest tile <= target dividing `dim` (multiple of `align`), else pad."""
    if dim <= target:
        return dim, dim                       # single full block
    t = (min(target, dim) // align) * align
    while t >= align:
        if dim % t == 0:
            return t, dim
        t -= align
    t = max(align, (target // align) * align)  # no aligned divisor: pad up
    padded = ((dim + t - 1) // t) * t
    return t, padded


# Conservative per-call tile budget: fits v7x (64 MiB physical VMEM) while
# still allowing multi-MB w1 DMAs; v5e/v6e (128 MiB) have extra headroom.
_TILE_VMEM_BUDGET = 40 << 20


@functools.partial(jax.jit,
                   static_argnames=("compute_dtype", "out_dtype",
                                    "tb_max", "tk_max"))
def symbolic_encoder(x, w1, b1, w2, b2, w3, b3, *,
                     compute_dtype=None, out_dtype=None,
                     tb_max=256, tk_max=8192):
    B, F = x.shape
    E = w1.shape[1]

    if out_dtype is None:
        out_dtype = x.dtype
    cdtype = jnp.dtype(compute_dtype) if compute_dtype is not None else x.dtype
    cs = jnp.dtype(cdtype).itemsize
    os = jnp.dtype(out_dtype).itemsize

    # --- tile selection -----------------------------------------------------
    tb, Bp = _pick_tile(B, tb_max, 8)
    # Budget the K tile so 2x(x tile + w1 tile) stays under the VMEM budget.
    per_tk = 2 * (tb + E) * cs
    tk_target = max(128, min(tk_max, (_TILE_VMEM_BUDGET // per_tk) // 128 * 128))
    tk, Fp = _pick_tile(F, tk_target, 128)

    # --- dtype casts / bias shape / padding ---------------------------------
    b1 = b1.reshape(1, E)
    b2 = b2.reshape(1, E)
    b3 = b3.reshape(1, E)
    if compute_dtype is not None:
        x = x.astype(cdtype)
        w1 = w1.astype(cdtype)
        w2 = w2.astype(cdtype)
        w3 = w3.astype(cdtype)
    if Bp != B or Fp != F:
        x = jnp.pad(x, ((0, Bp - B), (0, Fp - F)))
    if Fp != F:
        w1 = jnp.pad(w1, ((0, Fp - F), (0, 0)))

    # --- accumulator placement ----------------------------------------------
    use_scratch = jnp.dtype(out_dtype) != jnp.dtype(jnp.float32)
    scratch_shapes = [pltpu.VMEM((tb, E), jnp.float32)] if use_scratch else []

    # --- VMEM limit / cost estimate ------------------------------------------
    needed = 2 * (tb * tk + tk * E) * cs            # double-buffered x, w1 tiles
    needed += 2 * (2 * E * E * cs + 3 * E * 4)      # w2, w3, biases
    needed += 2 * tb * E * os + tb * E * 4          # output block (+ scratch)
    vmem_limit = int(min(56 << 20, max(32 << 20, 1.5 * needed)))

    cost = pl.CostEstimate(
        flops=2 * Bp * Fp * E + 4 * Bp * E * E,
        transcendentals=0,
        bytes_accessed=(Bp * Fp * cs                 # x read once
                        + (Bp // tb) * Fp * E * cs   # w1 per batch tile
                        + 2 * E * E * cs + 3 * E * 4
                        + Bp * E * os))

    grid = (Bp // tb, Fp // tk)
    out = pl.pallas_call(
        _mlp_kernel,
        out_shape=jax.ShapeDtypeStruct((Bp, E), out_dtype),
        grid_spec=pltpu.PrefetchScalarGridSpec(
            num_scalar_prefetch=0,
            grid=grid,
            in_specs=[
                pl.BlockSpec((tb, tk), lambda i, k: (i, k)),   # x tile
                pl.BlockSpec((tk, E), lambda i, k: (k, 0)),    # w1 tile (K-sliced)
                pl.BlockSpec((1, E), lambda i, k: (0, 0)),     # b1
                pl.BlockSpec((E, E), lambda i, k: (0, 0)),     # w2
                pl.BlockSpec((1, E), lambda i, k: (0, 0)),     # b2
                pl.BlockSpec((E, E), lambda i, k: (0, 0)),     # w3
                pl.BlockSpec((1, E), lambda i, k: (0, 0)),     # b3
            ],
            out_specs=pl.BlockSpec((tb, E), lambda i, k: (i, 0)),
            scratch_shapes=scratch_shapes,
        ),
        compiler_params=pltpu.CompilerParams(
            dimension_semantics=("parallel", "arbitrary"),
            vmem_limit_bytes=vmem_limit),
        cost_estimate=cost,
    )(x, w1, b1, w2, b2, w3, b3)

    if Bp != B:
        out = out[:B]
    return out


def _init_linear(key, fan_in, fan_out, dtype=jnp.float32):
    # PyTorch nn.Linear default: U(-1/sqrt(fan_in), 1/sqrt(fan_in)).
    # Weight stored as (in, out), i.e. the transpose of PyTorch's (out, in).
    kw, kb = jax.random.split(key)
    bound = 1.0 / np.sqrt(fan_in)
    w = jax.random.uniform(kw, (fan_in, fan_out), dtype, -bound, bound)
    b = jax.random.uniform(kb, (1, fan_out), dtype, -bound, bound)
    return w, b


def _reference(x, w1, b1, w2, b2, w3, b3):
    h = jnp.maximum(x @ w1 + b1, 0.0)
    h = jnp.maximum(h @ w2 + b2, 0.0)
    return h @ w3 + b3


if __name__ == "__main__":
    # Small, kernel-friendly stand-in for flownet_featsize (real sizes are huge,
    # e.g. 81920); semantics are identical, only the size is scaled down.
    B, F, E = 8, 1024, 128

    key = jax.random.PRNGKey(0)
    kx, k1, k2, k3 = jax.random.split(key, 4)

    observation = jax.random.normal(kx, (B, F), jnp.float32)
    w1, b1 = _init_linear(k1, F, E)
    w2, b2 = _init_linear(k2, E, E)
    w3, b3 = _init_linear(k3, E, E)

    ref = _reference(observation, w1, b1, w2, b2, w3, b3)

    # f32 path (single K step at this toy size).
    out = jax.block_until_ready(
        symbolic_encoder(observation, w1, b1, w2, b2, w3, b3))
    np.testing.assert_allclose(np.asarray(out), np.asarray(ref),
                               rtol=1e-5, atol=1e-5)

    # Exercise the multi-step K-tiled accumulation path.
    out_tiled = jax.block_until_ready(
        symbolic_encoder(observation, w1, b1, w2, b2, w3, b3, tk_max=256))
    np.testing.assert_allclose(np.asarray(out_tiled), np.asarray(ref),
                               rtol=1e-5, atol=1e-5)

    # bf16 streaming path (halves HBM traffic for real flownet sizes),
    # f32 accumulation inside the kernel.
    out_bf16 = jax.block_until_ready(
        symbolic_encoder(observation, w1, b1, w2, b2, w3, b3,
                         compute_dtype=jnp.bfloat16))
    np.testing.assert_allclose(np.asarray(out_bf16), np.asarray(ref),
                               rtol=5e-2, atol=5e-2)

    print("KERNEL_OK")
</pallas_src>

<mosaic_0001>
module attributes {stable_mosaic.version = 11 : i64} {
  func.func @_mlp_kernel(%arg0: i32, %arg1: i32, %arg2: memref<8x1024xf32, #tpu.memory_space<vmem>>, %arg3: memref<1024x128xf32, #tpu.memory_space<vmem>>, %arg4: memref<1x128xf32, #tpu.memory_space<vmem>>, %arg5: memref<128x128xf32, #tpu.memory_space<vmem>>, %arg6: memref<1x128xf32, #tpu.memory_space<vmem>>, %arg7: memref<128x128xf32, #tpu.memory_space<vmem>>, %arg8: memref<1x128xf32, #tpu.memory_space<vmem>>, %arg9: memref<8x128xf32, #tpu.memory_space<vmem>>) attributes {dimension_semantics = [#tpu.dimension_semantics<parallel>, #tpu.dimension_semantics<arbitrary>], iteration_bounds = array<i64: 1, 1>, scalar_prefetch = 0 : i64, scratch_operands = 0 : i64, tpu.core_type = #tpu.core_type<tc>, window_params = [{transform_indices = @transform_0, window_bounds = array<i64: 8, 1024>}, {transform_indices = @transform_1, window_bounds = array<i64: 1024, 128>}, {pipeline_mode = #tpu.pipeline_mode<synchronous>, transform_indices = @transform_2, window_bounds = array<i64: 1, 128>}, {pipeline_mode = #tpu.pipeline_mode<synchronous>, transform_indices = @transform_3, window_bounds = array<i64: 128, 128>}, {pipeline_mode = #tpu.pipeline_mode<synchronous>, transform_indices = @transform_4, window_bounds = array<i64: 1, 128>}, {pipeline_mode = #tpu.pipeline_mode<synchronous>, transform_indices = @transform_5, window_bounds = array<i64: 128, 128>}, {pipeline_mode = #tpu.pipeline_mode<synchronous>, transform_indices = @transform_6, window_bounds = array<i64: 1, 128>}, {transform_indices = @transform_7, window_bounds = array<i64: 8, 128>}]} {
    %c0_i32 = arith.constant 0 : i32
    %0 = arith.cmpi eq, %arg1, %c0_i32 : i32
    %1 = arith.extui %0 : i1 to i32
    %c0_i32_0 = arith.constant 0 : i32
    %2 = arith.cmpi ne, %1, %c0_i32_0 : i32
    scf.if %2 {
      %cst_10 = arith.constant 0.000000e+00 : f32
      %12 = vector.broadcast %cst_10 : f32 to vector<8x128xf32>
      %c0_11 = arith.constant 0 : index
      %c0_12 = arith.constant 0 : index
      %13 = vector.load %arg9[%c0_11, %c0_12] : memref<8x128xf32, #tpu.memory_space<vmem>>, vector<8x128xf32>
      tpu.vector_store %arg9[%c0_11, %c0_12], %12 {strides = array<i32>} : memref<8x128xf32, #tpu.memory_space<vmem>>, vector<8x128xf32>,
    } else {
    }
    %c0 = arith.constant 0 : index
    %c0_1 = arith.constant 0 : index
    %3 = vector.load %arg9[%c0, %c0_1] : memref<8x128xf32, #tpu.memory_space<vmem>>, vector<8x128xf32>
    %c0_2 = arith.constant 0 : index
    %c0_3 = arith.constant 0 : index
    %4 = vector.load %arg2[%c0_2, %c0_3] : memref<8x1024xf32, #tpu.memory_space<vmem>>, vector<8x1024xf32>
    %c0_4 = arith.constant 0 : index
    %c0_5 = arith.constant 0 : index
    %5 = vector.load %arg3[%c0_4, %c0_5] : memref<1024x128xf32, #tpu.memory_space<vmem>>, vector<1024x128xf32>
    %cst = arith.constant dense<0.000000e+00> : vector<8x128xf32>
    %6 = tpu.matmul %4, %5, %cst {dimension_numbers = #tpu.dot_dimension_numbers<[1], [0], [0], [1], [0, 0, 1, 1], [], []>} : vector<8x1024xf32>, vector<1024x128xf32>, vector<8x128xf32> -> vector<8x128xf32>
    %7 = arith.addf %3, %6 : vector<8x128xf32>
    %c0_6 = arith.constant 0 : index
    %c0_7 = arith.constant 0 : index
    %8 = vector.load %arg9[%c0_6, %c0_7] : memref<8x128xf32, #tpu.memory_space<vmem>>, vector<8x128xf32>
    tpu.vector_store %arg9[%c0_6, %c0_7], %7 {strides = array<i32>} : memref<8x128xf32, #tpu.memory_space<vmem>>, vector<8x128xf32>,
    %c0_i32_8 = arith.constant 0 : i32
    %9 = arith.cmpi eq, %arg1, %c0_i32_8 : i32
    %10 = arith.extui %9 : i1 to i32
    %c0_i32_9 = arith.constant 0 : i32
    %11 = arith.cmpi ne, %10, %c0_i32_9 : i32
    scf.if %11 {
      %c0_10 = arith.constant 0 : index
      %c0_11 = arith.constant 0 : index
      %12 = vector.load %arg9[%c0_10, %c0_11] : memref<8x128xf32, #tpu.memory_space<vmem>>, vector<8x128xf32>
      %c0_12 = arith.constant 0 : index
      %c0_13 = arith.constant 0 : index
      %13 = vector.load %arg4[%c0_12, %c0_13] : memref<1x128xf32, #tpu.memory_space<vmem>>, vector<1x128xf32>
      %14 = vector.broadcast %13 : vector<1x128xf32> to vector<8x128xf32>
      %15 = arith.addf %12, %14 : vector<8x128xf32>
      %cst_14 = arith.constant 0.000000e+00 : f32
      %16 = vector.broadcast %cst_14 : f32 to vector<8x128xf32>
      %17 = arith.maximumf %15, %16 : vector<8x128xf32>
      %c0_15 = arith.constant 0 : index
      %c0_16 = arith.constant 0 : index
      %18 = vector.load %arg5[%c0_15, %c0_16] : memref<128x128xf32, #tpu.memory_space<vmem>>, vector<128x128xf32>
      %cst_17 = arith.constant dense<0.000000e+00> : vector<8x128xf32>
      %19 = tpu.matmul %17, %18, %cst_17 {dimension_numbers = #tpu.dot_dimension_numbers<[1], [0], [0], [1], [0, 0, 1, 1], [], []>} : vector<8x128xf32>, vector<128x128xf32>, vector<8x128xf32> -> vector<8x128xf32>
      %c0_18 = arith.constant 0 : index
      %c0_19 = arith.constant 0 : index
      %20 = vector.load %arg6[%c0_18, %c0_19] : memref<1x128xf32, #tpu.memory_space<vmem>>, vector<1x128xf32>
      %21 = vector.broadcast %20 : vector<1x128xf32> to vector<8x128xf32>
      %22 = arith.addf %19, %21 : vector<8x128xf32>
      %cst_20 = arith.constant 0.000000e+00 : f32
      %23 = vector.broadcast %cst_20 : f32 to vector<8x128xf32>
      %24 = arith.maximumf %22, %23 : vector<8x128xf32>
      %c0_21 = arith.constant 0 : index
      %c0_22 = arith.constant 0 : index
      %25 = vector.load %arg7[%c0_21, %c0_22] : memref<128x128xf32, #tpu.memory_space<vmem>>, vector<128x128xf32>
      %cst_23 = arith.constant dense<0.000000e+00> : vector<8x128xf32>
      %26 = tpu.matmul %24, %25, %cst_23 {dimension_numbers = #tpu.dot_dimension_numbers<[1], [0], [0], [1], [0, 0, 1, 1], [], []>} : vector<8x128xf32>, vector<128x128xf32>, vector<8x128xf32> -> vector<8x128xf32>
      %c0_24 = arith.constant 0 : index
      %c0_25 = arith.constant 0 : index
      %27 = vector.load %arg8[%c0_24, %c0_25] : memref<1x128xf32, #tpu.memory_space<vmem>>, vector<1x128xf32>
      %28 = vector.broadcast %27 : vector<1x128xf32> to vector<8x128xf32>
      %29 = arith.addf %26, %28 : vector<8x128xf32>
      %c0_26 = arith.constant 0 : index
      %c0_27 = arith.constant 0 : index
      %30 = vector.load %arg9[%c0_26, %c0_27] : memref<8x128xf32, #tpu.memory_space<vmem>>, vector<8x128xf32>
      tpu.vector_store %arg9[%c0_26, %c0_27], %29 {strides = array<i32>} : memref<8x128xf32, #tpu.memory_space<vmem>>, vector<8x128xf32>,
    } else {
    }
    return
  }
  func.func @transform_0(%arg0: i32, %arg1: i32) -> (i32, i32) {
    %c0_i32 = arith.constant 0 : i32
    return %arg0, %arg1 : i32, i32
  }
  func.func @transform_1(%arg0: i32, %arg1: i32) -> (i32, i32) {
    %c0_i32 = arith.constant 0 : i32
    %c0_i32_0 = arith.constant 0 : i32
    return %arg1, %c0_i32 : i32, i32
  }
  func.func @transform_2(%arg0: i32, %arg1: i32) -> (i32, i32) {
    %c0_i32 = arith.constant 0 : i32
    %c0_i32_0 = arith.constant 0 : i32
    %c0_i32_1 = arith.constant 0 : i32
    return %c0_i32, %c0_i32_0 : i32, i32
  }
  func.func @transform_3(%arg0: i32, %arg1: i32) -> (i32, i32) {
    %c0_i32 = arith.constant 0 : i32
    %c0_i32_0 = arith.constant 0 : i32
    %c0_i32_1 = arith.constant 0 : i32
    return %c0_i32, %c0_i32_0 : i32, i32
  }
  func.func @transform_4(%arg0: i32, %arg1: i32) -> (i32, i32) {
    %c0_i32 = arith.constant 0 : i32
    %c0_i32_0 = arith.constant 0 : i32
    %c0_i32_1 = arith.constant 0 : i32
    return %c0_i32, %c0_i32_0 : i32, i32
  }
  func.func @transform_5(%arg0: i32, %arg1: i32) -> (i32, i32) {
    %c0_i32 = arith.constant 0 : i32
    %c0_i32_0 = arith.constant 0 : i32
    %c0_i32_1 = arith.constant 0 : i32
    return %c0_i32, %c0_i32_0 : i32, i32
  }
  func.func @transform_6(%arg0: i32, %arg1: i32) -> (i32, i32) {
    %c0_i32 = arith.constant 0 : i32
    %c0_i32_0 = arith.constant 0 : i32
    %c0_i32_1 = arith.constant 0 : i32
    return %c0_i32, %c0_i32_0 : i32, i32
  }
  func.func @transform_7(%arg0: i32, %arg1: i32) -> (i32, i32) {
    %c0_i32 = arith.constant 0 : i32
    %c0_i32_0 = arith.constant 0 : i32
    return %arg0, %c0_i32 : i32, i32
  }
}

</mosaic_0001>

<llo_original>
// kernel: symbolic_encoder.1
$region0: #{symbolic_encoder.1}
  #allocation0 [shape = 'u32[]', space=smem, size = 0x4, offset = 0x4, fixed_abs, tag = 'smem constant byte address 0x4 - core index']
  #allocation1 [shape = 'u32[144,128]{1,0:T(1,128)}', space=vmem, size = 0x12000, scoped, tag = 'internal scratch']
  %s0 = inlined_call_operand.hbm [shape: f32[8,1024], index: 0, kind: input, shape index: {}]
  %s1 = inlined_call_operand.hbm [shape: f32[1024,128], index: 1, kind: input, shape index: {}]
  %s2 = inlined_call_operand.vmem [shape: f32[1,128], index: 2, kind: input, shape index: {}]
  %s3 = inlined_call_operand.hbm [shape: f32[128,128], index: 3, kind: input, shape index: {}]
  %s4 = inlined_call_operand.vmem [shape: f32[1,128], index: 4, kind: input, shape index: {}]
  %s5 = inlined_call_operand.hbm [shape: f32[128,128], index: 5, kind: input, shape index: {}]
  %s6 = inlined_call_operand.vmem [shape: f32[1,128], index: 6, kind: input, shape index: {}]
  %s7 = inlined_call_operand.hbm [shape: f32[8,128], index: 7, kind: output, shape index: {}]
  %s8 = sld [smem:[#allocation0]]
  $region62: #{symbolic_encoder.1} parent=0
    _
  %s10 = ssub.s32 1, %s8
  %s11 = scalar_select 0, %s10, %s8
  $region1: #{symbolic_encoder.1} parent=0
    #allocation2 [shape = 'u8[32768]{0}', space=vmem, size = 0x8000, scoped, tag = 'input window, operand 0, single buffered']
    #allocation3 [shape = 's32[1]{0}', space=sflag, size = 0x4, scoped, tag = 'scoped memory for symbolic_encoder.1']
    #allocation4 [shape = 's32[1]{0}', space=sflag, size = 0x4, scoped, tag = 'scoped memory for symbolic_encoder.1']
    #allocation5 [shape = 'u8[524288]{0}', space=vmem, size = 0x80000, scoped, tag = 'input window, operand 1, single buffered']
    #allocation6 [shape = 's32[1]{0}', space=sflag, size = 0x4, scoped, tag = 'scoped memory for symbolic_encoder.1']
    #allocation7 [shape = 'u8[65536]{0}', space=vmem, size = 0x10000, scoped, tag = 'input window, operand 3, single buffered']
    #allocation8 [shape = 'u8[65536]{0}', space=vmem, size = 0x10000, scoped, tag = 'input window, operand 5, single buffered']
    #allocation9 [shape = 's32[1]{0}', space=sflag, size = 0x4, scoped, tag = 'scoped memory for symbolic_encoder.1']
    #allocation10 [shape = 'u8[4096]{0}', space=vmem, size = 0x1000, scoped, tag = 'output window, operand 0, single buffered']
    %12 = vsyncpa [#allocation3], 0
    %13 = vsyncpa [#allocation6], 0
    %14 = vsyncpa [#allocation9], 0
    %15 = vsyncpa [#allocation4], 0
    // Predicated region
    $region2: #{symbolic_encoder.1} parent=1 // pred_check
      _
    $region3: #{symbolic_encoder.1} parent=1 // pred_check_branch
      %17 = sbr.rel (0) target = $region5
    $region4: #{symbolic_encoder.1} parent=1 // pred_region
      %s19 = ssub.s32 1024, 1024
      %20 = vsyncadd [#allocation3], %s19
      %s22 = sshll.u32 [#allocation2], 4
      %s23 = int_to_ptr.vmem [resolvable:$true] %s22
      %25 = dma.hbm_to_vmem [thread:$0]  %s0, 1024, %s23, [#allocation3]
    $region5: #{symbolic_encoder.1} parent=1 // pred_fallthru
      _
    // Predicated region
    $region6: #{symbolic_encoder.1} parent=1 // pred_check
      _
    $region7: #{symbolic_encoder.1} parent=1 // pred_check_branch
      %27 = sbr.rel (0) target = $region9
    $region8: #{symbolic_encoder.1} parent=1 // pred_region
      %s29 = ssub.s32 16384, 16384
      %30 = vsyncadd [#allocation6], %s29
      %s31 = sshll.u32 [#allocation5], 4
      %s32 = int_to_ptr.vmem [resolvable:$true] %s31
      %37 = dma.hbm_to_vmem [thread:$0]  %s1, 16384, %s32, [#allocation6], 128, 128, 8
    $region9: #{symbolic_encoder.1} parent=1 // pred_fallthru
      _
    // Predicated region
    $region10: #{symbolic_encoder.1} parent=1 // pred_check
      _
    $region11: #{symbolic_encoder.1} parent=1 // pred_check_branch
      %39 = sbr.rel (0) target = $region13
    $region12: #{symbolic_encoder.1} parent=1 // pred_region
      _
    $region13: #{symbolic_encoder.1} parent=1 // pred_fallthru
      _
    // Predicated region
    $region14: #{symbolic_encoder.1} parent=1 // pred_check
      _
    $region15: #{symbolic_encoder.1} parent=1 // pred_check_branch
      %41 = sbr.rel (0) target = $region17
    $region16: #{symbolic_encoder.1} parent=1 // pred_region
      %s43 = ssub.s32 2048, 2048
      %44 = vsyncadd [#allocation6], %s43
      %s45 = sshll.u32 [#allocation7], 4
      %s46 = int_to_ptr.vmem [resolvable:$true] %s45
      %51 = dma.hbm_to_vmem [thread:$0]  %s3, 2048, %s46, [#allocation6], 128, 128, 8
    $region17: #{symbolic_encoder.1} parent=1 // pred_fallthru
      _
    // Predicated region
    $region18: #{symbolic_encoder.1} parent=1 // pred_check
      _
    $region19: #{symbolic_encoder.1} parent=1 // pred_check_branch
      %53 = sbr.rel (0) target = $region21
    $region20: #{symbolic_encoder.1} parent=1 // pred_region
      _
    $region21: #{symbolic_encoder.1} parent=1 // pred_fallthru
      _
    // Predicated region
    $region22: #{symbolic_encoder.1} parent=1 // pred_check
      _
    $region23: #{symbolic_encoder.1} parent=1 // pred_check_branch
      %55 = sbr.rel (0) target = $region25
    $region24: #{symbolic_encoder.1} parent=1 // pred_region
      %s57 = ssub.s32 2048, 2048
      %58 = vsyncadd [#allocation9], %s57
      %s59 = sshll.u32 [#allocation8], 4
      %s60 = int_to_ptr.vmem [resolvable:$true] %s59
      %65 = dma.hbm_to_vmem [thread:$0]  %s5, 2048, %s60, [#allocation9], 128, 128, 8
    $region25: #{symbolic_encoder.1} parent=1 // pred_fallthru
      _
    // Predicated region
    $region26: #{symbolic_encoder.1} parent=1 // pred_check
      _
    $region27: #{symbolic_encoder.1} parent=1 // pred_check_branch
      %67 = sbr.rel (0) target = $region29
    $region28: #{symbolic_encoder.1} parent=1 // pred_region
      _
    $region29: #{symbolic_encoder.1} parent=1 // pred_fallthru
      _
    // Predicated region
    $region30: #{symbolic_encoder.1} parent=1 // pred_check
      _
    $region31: #{symbolic_encoder.1} parent=1 // pred_check_branch
      %69 = sbr.rel (0) target = $region33
    $region32: #{symbolic_encoder.1} parent=1 // pred_region
      %70 = dma.done [#allocation3], 1024
    $region33: #{symbolic_encoder.1} parent=1 // pred_fallthru
      _
    // Predicated region
    $region34: #{symbolic_encoder.1} parent=1 // pred_check
      _
    $region35: #{symbolic_encoder.1} parent=1 // pred_check_branch
      %72 = sbr.rel (0) target = $region37
    $region36: #{symbolic_encoder.1} parent=1 // pred_region
      %73 = dma.done [#allocation6], 16384
    $region37: #{symbolic_encoder.1} parent=1 // pred_fallthru
      _
    // Predicated region
    $region38: #{symbolic_encoder.1} parent=1 // pred_check
      _
    $region39: #{symbolic_encoder.1} parent=1 // pred_check_branch
      %75 = sbr.rel (0) target = $region41
    $region40: #{symbolic_encoder.1} parent=1 // pred_region
      %76 = dma.done [#allocation6], 2048
    $region41: #{symbolic_encoder.1} parent=1 // pred_fallthru
      _
    // Predicated region
    $region42: #{symbolic_encoder.1} parent=1 // pred_check
      _
    $region43: #{symbolic_encoder.1} parent=1 // pred_check_branch
      %78 = sbr.rel (0) target = $region45
    $region44: #{symbolic_encoder.1} parent=1 // pred_region
      %79 = dma.done [#allocation9], 2048
    $region45: #{symbolic_encoder.1} parent=1 // pred_fallthru
      _
    %p80 = scmp.eq.s32.totalorder 0, 0
    // Predicated region
    $region46: #{symbolic_encoder.1} parent=1 // pred_check
      %p81 = pneg %p80
    $region47: #{symbolic_encoder.1} parent=1 // pred_check_branch
      %83 = sbr.rel (%p81) target = $region49
    $region48: #{symbolic_encoder.1} parent=1 // pred_region
      %84 = vst [vmem:[#allocation10] sm:$0xff] 0.0
    $region49: #{symbolic_encoder.1} parent=1 // pred_fallthru
      _
    %v85 = vld [vmem:[#allocation10] sm:$0xff]
    %v86 = vld [vmem:[#allocation2] sm:$0xff]
    %v87 = vld [vmem:[#allocation2 + $0x8] sm:$0xff]
    %v88 = vld [vmem:[#allocation2 + $0x10] sm:$0xff]
    %v89 = vld [vmem:[#allocation2 + $0x18] sm:$0xff]
    %v90 = vld [vmem:[#allocation2 + $0x20] sm:$0xff]
    %v91 = vld [vmem:[#allocation2 + $0x28] sm:$0xff]
    %v92 = vld [vmem:[#allocation2 + $0x30] sm:$0xff]
    %v93 = vld [vmem:[#allocation2 + $0x38] sm:$0xff]
    %v94 = vld [vmem:[#allocation5] sm:$0xff]
    %v95 = vld [vmem:[#allocation5 + $0x8] sm:$0xff]
    %v96 = vld [vmem:[#allocation5 + $0x10] sm:$0xff]
    %v97 = vld [vmem:[#allocation5 + $0x18] sm:$0xff]
    %v98 = vld [vmem:[#allocation5 + $0x20] sm:$0xff]
    %v99 = vld [vmem:[#allocation5 + $0x28] sm:$0xff]
    %v100 = vld [vmem:[#allocation5 + $0x30] sm:$0xff]
    %v101 = vld [vmem:[#allocation5 + $0x38] sm:$0xff]
    %v102 = vld [vmem:[#allocation5 + $0x40] sm:$0xff]
    %v103 = vld [vmem:[#allocation5 + $0x48] sm:$0xff]
    %v104 = vld [vmem:[#allocation5 + $0x50] sm:$0xff]
    %v105 = vld [vmem:[#allocation5 + $0x58] sm:$0xff]
    %v106 = vld [vmem:[#allocation5 + $0x60] sm:$0xff]
    %v107 = vld [vmem:[#allocation5 + $0x68] sm:$0xff]
    %v108 = vld [vmem:[#allocation5 + $0x70] sm:$0xff]
    %v109 = vld [vmem:[#allocation5 + $0x78] sm:$0xff]
    %v110 = vld [vmem:[#allocation5 + $0x80] sm:$0xff]
    %v111 = vld [vmem:[#allocation5 + $0x88] sm:$0xff]
    %v112 = vld [vmem:[#allocation5 + $0x90] sm:$0xff]
    %v113 = vld [vmem:[#allocation5 + $0x98] sm:$0xff]
    %v114 = vld [vmem:[#allocation5 + $0xa0] sm:$0xff]
    %v115 = vld [vmem:[#allocation5 + $0xa8] sm:$0xff]
    %v116 = vld [vmem:[#allocation5 + $0xb0] sm:$0xff]
    %v117 = vld [vmem:[#allocation5 + $0xb8] sm:$0xff]
    %v118 = vld [vmem:[#allocation5 + $0xc0] sm:$0xff]
    %v119 = vld [vmem:[#allocation5 + $0xc8] sm:$0xff]
    %v120 = vld [vmem:[#allocation5 + $0xd0] sm:$0xff]
    %v121 = vld [vmem:[#allocation5 + $0xd8] sm:$0xff]
    %v122 = vld [vmem:[#allocation5 + $0xe0] sm:$0xff]
    %v123 = vld [vmem:[#allocation5 + $0xe8] sm:$0xff]
    %v124 = vld [vmem:[#allocation5 + $0xf0] sm:$0xff]
    %v125 = vld [vmem:[#allocation5 + $0xf8] sm:$0xff]
    %v126 = vld [vmem:[#allocation5 + $0x100] sm:$0xff]
    %v127 = vld [vmem:[#allocation5 + $0x108] sm:$0xff]
    %v128 = vld [vmem:[#allocation5 + $0x110] sm:$0xff]
    %v129 = vld [vmem:[#allocation5 + $0x118] sm:$0xff]
    %v130 = vld [vmem:[#allocation5 + $0x120] sm:$0xff]
    %v131 = vld [vmem:[#allocation5 + $0x128] sm:$0xff]
    %v132 = vld [vmem:[#allocation5 + $0x130] sm:$0xff]
    %v133 = vld [vmem:[#allocation5 + $0x138] sm:$0xff]
    %v134 = vld [vmem:[#allocation5 + $0x140] sm:$0xff]
    %v135 = vld [vmem:[#allocation5 + $0x148] sm:$0xff]
    %v136 = vld [vmem:[#allocation5 + $0x150] sm:$0xff]
    %v137 = vld [vmem:[#allocation5 + $0x158] sm:$0xff]
    %v138 = vld [vmem:[#allocation5 + $0x160] sm:$0xff]
    %v139 = vld [vmem:[#allocation5 + $0x168] sm:$0xff]
    %v140 = vld [vmem:[#allocation5 + $0x170] sm:$0xff]
    %v141 = vld [vmem:[#allocation5 + $0x178] sm:$0xff]
    %v142 = vld [vmem:[#allocation5 + $0x180] sm:$0xff]
    %v143 = vld [vmem:[#allocation5 + $0x188] sm:$0xff]
    %v144 = vld [vmem:[#allocation5 + $0x190] sm:$0xff]
    %v145 = vld [vmem:[#allocation5 + $0x198] sm:$0xff]
    %v146 = vld [vmem:[#allocation5 + $0x1a0] sm:$0xff]
    %v147 = vld [vmem:[#allocation5 + $0x1a8] sm:$0xff]
    %v148 = vld [vmem:[#allocation5 + $0x1b0] sm:$0xff]
    %v149 = vld [vmem:[#allocation5 + $0x1b8] sm:$0xff]
    %v150 = vld [vmem:[#allocation5 + $0x1c0] sm:$0xff]
    %v151 = vld [vmem:[#allocation5 + $0x1c8] sm:$0xff]
    %v152 = vld [vmem:[#allocation5 + $0x1d0] sm:$0xff]
    %v153 = vld [vmem:[#allocation5 + $0x1d8] sm:$0xff]
    %v154 = vld [vmem:[#allocation5 + $0x1e0] sm:$0xff]
    %v155 = vld [vmem:[#allocation5 + $0x1e8] sm:$0xff]
    %v156 = vld [vmem:[#allocation5 + $0x1f0] sm:$0xff]
    %v157 = vld [vmem:[#allocation5 + $0x1f8] sm:$0xff]
    %v158 = vld [vmem:[#allocation5 + $0x200] sm:$0xff]
    %v159 = vld [vmem:[#allocation5 + $0x208] sm:$0xff]
    %v160 = vld [vmem:[#allocation5 + $0x210] sm:$0xff]
    %v161 = vld [vmem:[#allocation5 + $0x218] sm:$0xff]
    %v162 = vld [vmem:[#allocation5 + $0x220] sm:$0xff]
    %v163 = vld [vmem:[#allocation5 + $0x228] sm:$0xff]
    %v164 = vld [vmem:[#allocation5 + $0x230] sm:$0xff]
    %v165 = vld [vmem:[#allocation5 + $0x238] sm:$0xff]
    %v166 = vld [vmem:[#allocation5 + $0x240] sm:$0xff]
    %v167 = vld [vmem:[#allocation5 + $0x248] sm:$0xff]
    %v168 = vld [vmem:[#allocation5 + $0x250] sm:$0xff]
    %v169 = vld [vmem:[#allocation5 + $0x258] sm:$0xff]
    %v170 = vld [vmem:[#allocation5 + $0x260] sm:$0xff]
    %v171 = vld [vmem:[#allocation5 + $0x268] sm:$0xff]
    %v172 = vld [vmem:[#allocation5 + $0x270] sm:$0xff]
    %v173 = vld [vmem:[#allocation5 + $0x278] sm:$0xff]
    %v174 = vld [vmem:[#allocation5 + $0x280] sm:$0xff]
    %v175 = vld [vmem:[#allocation5 + $0x288] sm:$0xff]
    %v176 = vld [vmem:[#allocation5 + $0x290] sm:$0xff]
    %v177 = vld [vmem:[#allocation5 + $0x298] sm:$0xff]
    %v178 = vld [vmem:[#allocation5 + $0x2a0] sm:$0xff]
    %v179 = vld [vmem:[#allocation5 + $0x2a8] sm:$0xff]
    %v180 = vld [vmem:[#allocation5 + $0x2b0] sm:$0xff]
    %v181 = vld [vmem:[#allocation5 + $0x2b8] sm:$0xff]
    %v182 = vld [vmem:[#allocation5 + $0x2c0] sm:$0xff]
    %v183 = vld [vmem:[#allocation5 + $0x2c8] sm:$0xff]
    %v184 = vld [vmem:[#allocation5 + $0x2d0] sm:$0xff]
    %v185 = vld [vmem:[#allocation5 + $0x2d8] sm:$0xff]
    %v186 = vld [vmem:[#allocation5 + $0x2e0] sm:$0xff]
    %v187 = vld [vmem:[#allocation5 + $0x2e8] sm:$0xff]
    %v188 = vld [vmem:[#allocation5 + $0x2f0] sm:$0xff]
    %v189 = vld [vmem:[#allocation5 + $0x2f8] sm:$0xff]
    %v190 = vld [vmem:[#allocation5 + $0x300] sm:$0xff]
    %v191 = vld [vmem:[#allocation5 + $0x308] sm:$0xff]
    %v192 = vld [vmem:[#allocation5 + $0x310] sm:$0xff]
    %v193 = vld [vmem:[#allocation5 + $0x318] sm:$0xff]
    %v194 = vld [vmem:[#allocation5 + $0x320] sm:$0xff]
    %v195 = vld [vmem:[#allocation5 + $0x328] sm:$0xff]
    %v196 = vld [vmem:[#allocation5 + $0x330] sm:$0xff]
    %v197 = vld [vmem:[#allocation5 + $0x338] sm:$0xff]
    %v198 = vld [vmem:[#allocation5 + $0x340] sm:$0xff]
    %v199 = vld [vmem:[#allocation5 + $0x348] sm:$0xff]
    %v200 = vld [vmem:[#allocation5 + $0x350] sm:$0xff]
    %v201 = vld [vmem:[#allocation5 + $0x358] sm:$0xff]
    %v202 = vld [vmem:[#allocation5 + $0x360] sm:$0xff]
    %v203 = vld [vmem:[#allocation5 + $0x368] sm:$0xff]
    %v204 = vld [vmem:[#allocation5 + $0x370] sm:$0xff]
    %v205 = vld [vmem:[#allocation5 + $0x378] sm:$0xff]
    %v206 = vld [vmem:[#allocation5 + $0x380] sm:$0xff]
    %v207 = vld [vmem:[#allocation5 + $0x388] sm:$0xff]
    %v208 = vld [vmem:[#allocation5 + $0x390] sm:$0xff]
    %v209 = vld [vmem:[#allocation5 + $0x398] sm:$0xff]
    %v210 = vld [vmem:[#allocation5 + $0x3a0] sm:$0xff]
    %v211 = vld [vmem:[#allocation5 + $0x3a8] sm:$0xff]
    %v212 = vld [vmem:[#allocation5 + $0x3b0] sm:$0xff]
    %v213 = vld [vmem:[#allocation5 + $0x3b8] sm:$0xff]
    %v214 = vld [vmem:[#allocation5 + $0x3c0] sm:$0xff]
    %v215 = vld [vmem:[#allocation5 + $0x3c8] sm:$0xff]
    %v216 = vld [vmem:[#allocation5 + $0x3d0] sm:$0xff]
    %v217 = vld [vmem:[#allocation5 + $0x3d8] sm:$0xff]
    %v218 = vld [vmem:[#allocation5 + $0x3e0] sm:$0xff]
    %v219 = vld [vmem:[#allocation5 + $0x3e8] sm:$0xff]
    %v220 = vld [vmem:[#allocation5 + $0x3f0] sm:$0xff]
    %v221 = vld [vmem:[#allocation5 + $0x3f8] sm:$0xff]
    %222 = vmatprep.subr.mxu0 0.0
    %223 = vmatpush1.msra.mxu0 %v94
    %224 = vmatprep.subr.mxu0 0.0
    %225 = vmatpush1.msra.mxu0 %v95
    %226 = vmatprep.subr.mxu0 0.0
    %227 = vmatpush1.msra.mxu0 %v96
    %228 = vmatprep.subr.mxu0 0.0
    %229 = vmatpush1.msra.mxu0 %v97
    %230 = vmatprep.subr.mxu0 0.0
    %231 = vmatpush1.msra.mxu0 %v98
    %232 = vmatprep.subr.mxu0 0.0
    %233 = vmatpush1.msra.mxu0 %v99
    %234 = vmatprep.subr.mxu0 0.0
    %235 = vmatpush1.msra.mxu0 %v100
    %236 = vmatprep.subr.mxu0 0.0
    %237 = vmatpush1.msra.mxu0 %v101
    %238 = vmatprep.subr.mxu0 0.0
    %239 = vmatpush1.msra.mxu0 %v102
    %240 = vmatprep.subr.mxu0 0.0
    %241 = vmatpush1.msra.mxu0 %v103
    %242 = vmatprep.subr.mxu0 0.0
    %243 = vmatpush1.msra.mxu0 %v104
    %244 = vmatprep.subr.mxu0 0.0
    %245 = vmatpush1.msra.mxu0 %v105
    %246 = vmatprep.subr.mxu0 0.0
    %247 = vmatpush1.msra.mxu0 %v106
    %248 = vmatprep.subr.mxu0 0.0
    %249 = vmatpush1.msra.mxu0 %v107
    %250 = vmatprep.subr.mxu0 0.0
    %251 = vmatpush1.msra.mxu0 %v108
    %252 = vmatprep.subr.mxu0 0.0
    %253 = vmatpush1.msra.mxu0 %v109
    %254 = vmatprep.subr.mxu0 0.0
    %255 = vmatpush1.msra.mxu0 %v110
    %256 = vmatprep.subr.mxu0 0.0
    %257 = vmatpush1.msra.mxu0 %v111
    %258 = vmatprep.subr.mxu0 0.0
    %259 = vmatpush1.msra.mxu0 %v112
    %260 = vmatprep.subr.mxu0 0.0
    %261 = vmatpush1.msra.mxu0 %v113
    %262 = vmatprep.subr.mxu0 0.0
    %263 = vmatpush1.msra.mxu0 %v114
    %264 = vmatprep.subr.mxu0 0.0
    %265 = vmatpush1.msra.mxu0 %v115
    %266 = vmatprep.subr.mxu0 0.0
    %267 = vmatpush1.msra.mxu0 %v116
    %268 = vmatprep.subr.mxu0 0.0
    %269 = vmatpush1.msra.mxu0 %v117
    %270 = vmatprep.subr.mxu0 0.0
    %271 = vmatpush1.msra.mxu0 %v118
    %272 = vmatprep.subr.mxu0 0.0
    %273 = vmatpush1.msra.mxu0 %v119
    %274 = vmatprep.subr.mxu0 0.0
    %275 = vmatpush1.msra.mxu0 %v120
    %276 = vmatprep.subr.mxu0 0.0
    %277 = vmatpush1.msra.mxu0 %v121
    %278 = vmatprep.subr.mxu0 0.0
    %279 = vmatpush1.msra.mxu0 %v122
    %280 = vmatprep.subr.mxu0 0.0
    %281 = vmatpush1.msra.mxu0 %v123
    %282 = vmatprep.subr.mxu0 0.0
    %283 = vmatpush1.msra.mxu0 %v124
    %284 = vmatprep.subr.mxu0 0.0
    %285 = vmatpush1.msra.mxu0 %v125
    %286 = vmatprep.mubr.f32.mxu0 %v87
    %287 = vmatmul.mubr.f32.gmra.mrb[0].mxu0 %v86
    %v288 = vpop.f32.mrb[0].mxu0
    %v289 = vadd.f32 0.0, %v288
    %v290 = vpop.f32.mrb[0].mxu0
    %291 = vdwg.mxu0
    %292 = vmatprep.subr.mxu0 0.0
    %293 = vmatpush1.msra.mxu0 %v126
    %294 = vmatprep.subr.mxu0 0.0
    %295 = vmatpush1.msra.mxu0 %v127
    %296 = vmatprep.subr.mxu0 0.0
    %297 = vmatpush1.msra.mxu0 %v128
    %298 = vmatprep.subr.mxu0 0.0
    %299 = vmatpush1.msra.mxu0 %v129
    %300 = vmatprep.subr.mxu0 0.0
    %301 = vmatpush1.msra.mxu0 %v130
    %302 = vmatprep.subr.mxu0 0.0
    %303 = vmatpush1.msra.mxu0 %v131
    %304 = vmatprep.subr.mxu0 0.0
    %305 = vmatpush1.msra.mxu0 %v132
    %306 = vmatprep.subr.mxu0 0.0
    %307 = vmatpush1.msra.mxu0 %v133
    %308 = vmatprep.subr.mxu0 0.0
    %309 = vmatpush1.msra.mxu0 %v134
    %310 = vmatprep.subr.mxu0 0.0
    %311 = vmatpush1.msra.mxu0 %v135
    %312 = vmatprep.subr.mxu0 0.0
    %313 = vmatpush1.msra.mxu0 %v136
    %314 = vmatprep.subr.mxu0 0.0
    %315 = vmatpush1.msra.mxu0 %v137
    %316 = vmatprep.subr.mxu0 0.0
    %317 = vmatpush1.msra.mxu0 %v138
    %318 = vmatprep.subr.mxu0 0.0
    %319 = vmatpush1.msra.mxu0 %v139
    %320 = vmatprep.subr.mxu0 0.0
    %321 = vmatpush1.msra.mxu0 %v140
    %322 = vmatprep.subr.mxu0 0.0
    %323 = vmatpush1.msra.mxu0 %v141
    %324 = vmatprep.subr.mxu0 0.0
    %325 = vmatpush1.msra.mxu0 %v142
    %326 = vmatprep.subr.mxu0 0.0
    %327 = vmatpush1.msra.mxu0 %v143
    %328 = vmatprep.subr.mxu0 0.0
    %329 = vmatpush1.msra.mxu0 %v144
    %330 = vmatprep.subr.mxu0 0.0
    %331 = vmatpush1.msra.mxu0 %v145
    %332 = vmatprep.subr.mxu0 0.0
    %333 = vmatpush1.msra.mxu0 %v146
    %334 = vmatprep.subr.mxu0 0.0
    %335 = vmatpush1.msra.mxu0 %v147
    %336 = vmatprep.subr.mxu0 0.0
    %337 = vmatpush1.msra.mxu0 %v148
    %338 = vmatprep.subr.mxu0 0.0
    %339 = vmatpush1.msra.mxu0 %v149
    %340 = vmatprep.subr.mxu0 0.0
    %341 = vmatpush1.msra.mxu0 %v150
    %342 = vmatprep.subr.mxu0 0.0
    %343 = vmatpush1.msra.mxu0 %v151
    %344 = vmatprep.subr.mxu0 0.0
    %345 = vmatpush1.msra.mxu0 %v152
    %346 = vmatprep.subr.mxu0 0.0
    %347 = vmatpush1.msra.mxu0 %v153
    %348 = vmatprep.subr.mxu0 0.0
    %349 = vmatpush1.msra.mxu0 %v154
    %350 = vmatprep.subr.mxu0 0.0
    %351 = vmatpush1.msra.mxu0 %v155
    %352 = vmatprep.subr.mxu0 0.0
    %353 = vmatpush1.msra.mxu0 %v156
    %354 = vmatprep.subr.mxu0 0.0
    %355 = vmatpush1.msra.mxu0 %v157
    %356 = vmatprep.mubr.f32.mxu0 %v89
    %357 = vmatmul.mubr.f32.gmra.mrb[0].mxu0 %v88
    %v358 = vpop.f32.mrb[0].mxu0
    %v359 = vadd.f32 %v289, %v358
    %v360 = vpop.f32.mrb[0].mxu0
    %361 = vdwg.mxu0
    %362 = vmatprep.subr.mxu0 0.0
    %363 = vmatpush1.msra.mxu0 %v158
    %364 = vmatprep.subr.mxu0 0.0
    %365 = vmatpush1.msra.mxu0 %v159
    %366 = vmatprep.subr.mxu0 0.0
    %367 = vmatpush1.msra.mxu0 %v160
    %368 = vmatprep.subr.mxu0 0.0
    %369 = vmatpush1.msra.mxu0 %v161
    %370 = vmatprep.subr.mxu0 0.0
    %371 = vmatpush1.msra.mxu0 %v162
    %372 = vmatprep.subr.mxu0 0.0
    %373 = vmatpush1.msra.mxu0 %v163
    %374 = vmatprep.subr.mxu0 0.0
    %375 = vmatpush1.msra.mxu0 %v164
    %376 = vmatprep.subr.mxu0 0.0
    %377 = vmatpush1.msra.mxu0 %v165
    %378 = vmatprep.subr.mxu0 0.0
    %379 = vmatpush1.msra.mxu0 %v166
    %380 = vmatprep.subr.mxu0 0.0
    %381 = vmatpush1.msra.mxu0 %v167
    %382 = vmatprep.subr.mxu0 0.0
    %383 = vmatpush1.msra.mxu0 %v168
    %384 = vmatprep.subr.mxu0 0.0
    %385 = vmatpush1.msra.mxu0 %v169
    %386 = vmatprep.subr.mxu0 0.0
    %387 = vmatpush1.msra.mxu0 %v170
    %388 = vmatprep.subr.mxu0 0.0
    %389 = vmatpush1.msra.mxu0 %v171
    %390 = vmatprep.subr.mxu0 0.0
    %391 = vmatpush1.msra.mxu0 %v172
    %392 = vmatprep.subr.mxu0 0.0
    %393 = vmatpush1.msra.mxu0 %v173
    %394 = vmatprep.subr.mxu0 0.0
    %395 = vmatpush1.msra.mxu0 %v174
    %396 = vmatprep.subr.mxu0 0.0
    %397 = vmatpush1.msra.mxu0 %v175
    %398 = vmatprep.subr.mxu0 0.0
    %399 = vmatpush1.msra.mxu0 %v176
    %400 = vmatprep.subr.mxu0 0.0
    %401 = vmatpush1.msra.mxu0 %v177
    %402 = vmatprep.subr.mxu0 0.0
    %403 = vmatpush1.msra.mxu0 %v178
    %404 = vmatprep.subr.mxu0 0.0
    %405 = vmatpush1.msra.mxu0 %v179
    %406 = vmatprep.subr.mxu0 0.0
    %407 = vmatpush1.msra.mxu0 %v180
    %408 = vmatprep.subr.mxu0 0.0
    %409 = vmatpush1.msra.mxu0 %v181
    %410 = vmatprep.subr.mxu0 0.0
    %411 = vmatpush1.msra.mxu0 %v182
    %412 = vmatprep.subr.mxu0 0.0
    %413 = vmatpush1.msra.mxu0 %v183
    %414 = vmatprep.subr.mxu0 0.0
    %415 = vmatpush1.msra.mxu0 %v184
    %416 = vmatprep.subr.mxu0 0.0
    %417 = vmatpush1.msra.mxu0 %v185
    %418 = vmatprep.subr.mxu0 0.0
    %419 = vmatpush1.msra.mxu0 %v186
    %420 = vmatprep.subr.mxu0 0.0
    %421 = vmatpush1.msra.mxu0 %v187
    %422 = vmatprep.subr.mxu0 0.0
    %423 = vmatpush1.msra.mxu0 %v188
    %424 = vmatprep.subr.mxu0 0.0
    %425 = vmatpush1.msra.mxu0 %v189
    %426 = vmatprep.mubr.f32.mxu0 %v91
    %427 = vmatmul.mubr.f32.gmra.mrb[0].mxu0 %v90
    %v428 = vpop.f32.mrb[0].mxu0
    %v429 = vadd.f32 %v359, %v428
    %v430 = vpop.f32.mrb[0].mxu0
    %431 = vdwg.mxu0
    %432 = vmatprep.subr.mxu0 0.0
    %433 = vmatpush1.msra.mxu0 %v190
    %434 = vmatprep.subr.mxu0 0.0
    %435 = vmatpush1.msra.mxu0 %v191
    %436 = vmatprep.subr.mxu0 0.0
    %437 = vmatpush1.msra.mxu0 %v192
    %438 = vmatprep.subr.mxu0 0.0
    %439 = vmatpush1.msra.mxu0 %v193
    %440 = vmatprep.subr.mxu0 0.0
    %441 = vmatpush1.msra.mxu0 %v194
    %442 = vmatprep.subr.mxu0 0.0
    %443 = vmatpush1.msra.mxu0 %v195
    %444 = vmatprep.subr.mxu0 0.0
    %445 = vmatpush1.msra.mxu0 %v196
    %446 = vmatprep.subr.mxu0 0.0
    %447 = vmatpush1.msra.mxu0 %v197
    %448 = vmatprep.subr.mxu0 0.0
    %449 = vmatpush1.msra.mxu0 %v198
    %450 = vmatprep.subr.mxu0 0.0
    %451 = vmatpush1.msra.mxu0 %v199
    %452 = vmatprep.subr.mxu0 0.0
    %453 = vmatpush1.msra.mxu0 %v200
    %454 = vmatprep.subr.mxu0 0.0
    %455 = vmatpush1.msra.mxu0 %v201
    %456 = vmatprep.subr.mxu0 0.0
    %457 = vmatpush1.msra.mxu0 %v202
    %458 = vmatprep.subr.mxu0 0.0
    %459 = vmatpush1.msra.mxu0 %v203
    %460 = vmatprep.subr.mxu0 0.0
    %461 = vmatpush1.msra.mxu0 %v204
    %462 = vmatprep.subr.mxu0 0.0
    %463 = vmatpush1.msra.mxu0 %v205
    %464 = vmatprep.subr.mxu0 0.0
    %465 = vmatpush1.msra.mxu0 %v206
    %466 = vmatprep.subr.mxu0 0.0
    %467 = vmatpush1.msra.mxu0 %v207
    %468 = vmatprep.subr.mxu0 0.0
    %469 = vmatpush1.msra.mxu0 %v208
    %470 = vmatprep.subr.mxu0 0.0
    %471 = vmatpush1.msra.mxu0 %v209
    %472 = vmatprep.subr.mxu0 0.0
    %473 = vmatpush1.msra.mxu0 %v210
    %474 = vmatprep.subr.mxu0 0.0
    %475 = vmatpush1.msra.mxu0 %v211
    %476 = vmatprep.subr.mxu0 0.0
    %477 = vmatpush1.msra.mxu0 %v212
    %478 = vmatprep.subr.mxu0 0.0
    %479 = vmatpush1.msra.mxu0 %v213
    %480 = vmatprep.subr.mxu0 0.0
    %481 = vmatpush1.msra.mxu0 %v214
    %482 = vmatprep.subr.mxu0 0.0
    %483 = vmatpush1.msra.mxu0 %v215
    %484 = vmatprep.subr.mxu0 0.0
    %485 = vmatpush1.msra.mxu0 %v216
    %486 = vmatprep.subr.mxu0 0.0
    %487 = vmatpush1.msra.mxu0 %v217
    %488 = vmatprep.subr.mxu0 0.0
    %489 = vmatpush1.msra.mxu0 %v218
    %490 = vmatprep.subr.mxu0 0.0
    %491 = vmatpush1.msra.mxu0 %v219
    %492 = vmatprep.subr.mxu0 0.0
    %493 = vmatpush1.msra.mxu0 %v220
    %494 = vmatprep.subr.mxu0 0.0
    %495 = vmatpush1.msra.mxu0 %v221
    %496 = vmatprep.mubr.f32.mxu0 %v93
    %497 = vmatmul.mubr.f32.gmra.mrb[0].mxu0 %v92
    %v498 = vpop.f32.mrb[0].mxu0
    %v499 = vadd.f32 %v429, %v498
    %v500 = vpop.f32.mrb[0].mxu0
    %501 = vdwg.mxu0
    %v502 = vadd.f32 %v85, %v499
    %503 = vst [vmem:[#allocation10] sm:$0xff] %v502
    // Predicated region
    $region50: #{symbolic_encoder.1} parent=1 // pred_check
      %p504 = pneg %p80
    $region51: #{symbolic_encoder.1} parent=1 // pred_check_branch
      %506 = sbr.rel (%p504) target = $region53
    $region52: #{symbolic_encoder.1} parent=1 // pred_region
      %v507 = vld [vmem:[#allocation10] sm:$0xff]
      %v508 = vld [vmem:[%s2] sm:$0x1]
      %v510 = vlaneseq
      %v511 = vshrl.u32 %v510, 7
      %v512 = vsub.s32 0, %v511
      %v513 = vrot.slane %v508, %v512
      %v515 = vadd.f32 %v507, %v513
      %v516 = vmax.f32 %v515, 0.0
      %v517 = vld [vmem:[#allocation7] sm:$0xff]
      %v518 = vld [vmem:[#allocation7 + $0x8] sm:$0xff]
      %v519 = vld [vmem:[#allocation7 + $0x10] sm:$0xff]
      %v520 = vld [vmem:[#allocation7 + $0x18] sm:$0xff]
      %v521 = vld [vmem:[#allocation7 + $0x20] sm:$0xff]
      %v522 = vld [vmem:[#allocation7 + $0x28] sm:$0xff]
      %v523 = vld [vmem:[#allocation7 + $0x30] sm:$0xff]
      %v524 = vld [vmem:[#allocation7 + $0x38] sm:$0xff]
      %v525 = vld [vmem:[#allocation7 + $0x40] sm:$0xff]
      %v526 = vld [vmem:[#allocation7 + $0x48] sm:$0xff]
      %v527 = vld [vmem:[#allocation7 + $0x50] sm:$0xff]
      %v528 = vld [vmem:[#allocation7 + $0x58] sm:$0xff]
      %v529 = vld [vmem:[#allocation7 + $0x60] sm:$0xff]
      %v530 = vld [vmem:[#allocation7 + $0x68] sm:$0xff]
      %v531 = vld [vmem:[#allocation7 + $0x70] sm:$0xff]
      %v532 = vld [vmem:[#allocation7 + $0x78] sm:$0xff]
      %v533 = vld [vmem:[%s4] sm:$0x1]
      %v535 = vlaneseq
      %v536 = vshrl.u32 %v535, 7
      %v537 = vsub.s32 0, %v536
      %v538 = vrot.slane %v533, %v537
      %540 = vmatprep.subr.mxu0 0.0
      %541 = vmatpush1.msra.mxu0 %v517
      %542 = vmatprep.subr.mxu0 0.0
      %543 = vmatpush1.msra.mxu0 %v518
      %544 = vmatprep.subr.mxu0 0.0
      %545 = vmatpush1.msra.mxu0 %v519
      %546 = vmatprep.subr.mxu0 0.0
      %547 = vmatpush1.msra.mxu0 %v520
      %548 = vmatprep.subr.mxu0 0.0
      %549 = vmatpush1.msra.mxu0 %v521
      %550 = vmatprep.subr.mxu0 0.0
      %551 = vmatpush1.msra.mxu0 %v522
      %552 = vmatprep.subr.mxu0 0.0
      %553 = vmatpush1.msra.mxu0 %v523
      %554 = vmatprep.subr.mxu0 0.0
      %555 = vmatpush1.msra.mxu0 %v524
      %556 = vmatprep.subr.mxu0 0.0
      %557 = vmatpush1.msra.mxu0 %v525
      %558 = vmatprep.subr.mxu0 0.0
      %559 = vmatpush1.msra.mxu0 %v526
      %560 = vmatprep.subr.mxu0 0.0
      %561 = vmatpush1.msra.mxu0 %v527
      %562 = vmatprep.subr.mxu0 0.0
      %563 = vmatpush1.msra.mxu0 %v528
      %564 = vmatprep.subr.mxu0 0.0
      %565 = vmatpush1.msra.mxu0 %v529
      %566 = vmatprep.subr.mxu0 0.0
      %567 = vmatpush1.msra.mxu0 %v530
      %568 = vmatprep.subr.mxu0 0.0
      %569 = vmatpush1.msra.mxu0 %v531
      %570 = vmatprep.subr.mxu0 0.0
      %571 = vmatpush1.msra.mxu0 %v532
      %572 = vmatprep.subr.mxu0 0.0
      %573 = vmatpush1.msra.mxu0 0.0
      %574 = vmatprep.subr.mxu0 0.0
      %575 = vmatpush1.msra.mxu0 0.0
      %576 = vmatprep.subr.mxu0 0.0
      %577 = vmatpush1.msra.mxu0 0.0
      %578 = vmatprep.subr.mxu0 0.0
      %579 = vmatpush1.msra.mxu0 0.0
      %580 = vmatprep.subr.mxu0 0.0
      %581 = vmatpush1.msra.mxu0 0.0
      %582 = vmatprep.subr.mxu0 0.0
      %583 = vmatpush1.msra.mxu0 0.0
      %584 = vmatprep.subr.mxu0 0.0
      %585 = vmatpush1.msra.mxu0 0.0
      %586 = vmatprep.subr.mxu0 0.0
      %587 = vmatpush1.msra.mxu0 0.0
      %588 = vmatprep.subr.mxu0 0.0
      %589 = vmatpush1.msra.mxu0 0.0
      %590 = vmatprep.subr.mxu0 0.0
      %591 = vmatpush1.msra.mxu0 0.0
      %592 = vmatprep.subr.mxu0 0.0
      %593 = vmatpush1.msra.mxu0 0.0
      %594 = vmatprep.subr.mxu0 0.0
      %595 = vmatpush1.msra.mxu0 0.0
      %596 = vmatprep.subr.mxu0 0.0
      %597 = vmatpush1.msra.mxu0 0.0
      %598 = vmatprep.subr.mxu0 0.0
      %599 = vmatpush1.msra.mxu0 0.0
      %600 = vmatprep.subr.mxu0 0.0
      %601 = vmatpush1.msra.mxu0 0.0
      %602 = vmatprep.subr.mxu0 0.0
      %603 = vmatpush1.msra.mxu0 0.0
      %604 = vmatprep.mubr.f32.mxu0 0.0
      %605 = vmatmul.mubr.f32.gmra.mrb[0].mxu0 %v516
      %v606 = vpop.f32.mrb[0].mxu0
      %v607 = vadd.f32 %v538, %v606
      %v608 = vpop.f32.mrb[0].mxu0
      %609 = vdwg.mxu0
      %v610 = vmax.f32 %v607, 0.0
      %v611 = vld [vmem:[#allocation8] sm:$0xff]
      %v612 = vld [vmem:[#allocation8 + $0x8] sm:$0xff]
      %v613 = vld [vmem:[#allocation8 + $0x10] sm:$0xff]
      %v614 = vld [vmem:[#allocation8 + $0x18] sm:$0xff]
      %v615 = vld [vmem:[#allocation8 + $0x20] sm:$0xff]
      %v616 = vld [vmem:[#allocation8 + $0x28] sm:$0xff]
      %v617 = vld [vmem:[#allocation8 + $0x30] sm:$0xff]
      %v618 = vld [vmem:[#allocation8 + $0x38] sm:$0xff]
      %v619 = vld [vmem:[#allocation8 + $0x40] sm:$0xff]
      %v620 = vld [vmem:[#allocation8 + $0x48] sm:$0xff]
      %v621 = vld [vmem:[#allocation8 + $0x50] sm:$0xff]
      %v622 = vld [vmem:[#allocation8 + $0x58] sm:$0xff]
      %v623 = vld [vmem:[#allocation8 + $0x60] sm:$0xff]
      %v624 = vld [vmem:[#allocation8 + $0x68] sm:$0xff]
      %v625 = vld [vmem:[#allocation8 + $0x70] sm:$0xff]
      %v626 = vld [vmem:[#allocation8 + $0x78] sm:$0xff]
      %v627 = vld [vmem:[%s6] sm:$0x1]
      %v629 = vlaneseq
      %v630 = vshrl.u32 %v629, 7
      %v631 = vsub.s32 0, %v630
      %v632 = vrot.slane %v627, %v631
      %634 = vmatprep.subr.mxu0 0.0
      %635 = vmatpush1.msra.mxu0 %v611
      %636 = vmatprep.subr.mxu0 0.0
      %637 = vmatpush1.msra.mxu0 %v612
      %638 = vmatprep.subr.mxu0 0.0
      %639 = vmatpush1.msra.mxu0 %v613
      %640 = vmatprep.subr.mxu0 0.0
      %641 = vmatpush1.msra.mxu0 %v614
      %642 = vmatprep.subr.mxu0 0.0
      %643 = vmatpush1.msra.mxu0 %v615
      %644 = vmatprep.subr.mxu0 0.0
      %645 = vmatpush1.msra.mxu0 %v616
      %646 = vmatprep.subr.mxu0 0.0
      %647 = vmatpush1.msra.mxu0 %v617
      %648 = vmatprep.subr.mxu0 0.0
      %649 = vmatpush1.msra.mxu0 %v618
      %650 = vmatprep.subr.mxu0 0.0
      %651 = vmatpush1.msra.mxu0 %v619
      %652 = vmatprep.subr.mxu0 0.0
      %653 = vmatpush1.msra.mxu0 %v620
      %654 = vmatprep.subr.mxu0 0.0
      %655 = vmatpush1.msra.mxu0 %v621
      %656 = vmatprep.subr.mxu0 0.0
      %657 = vmatpush1.msra.mxu0 %v622
      %658 = vmatprep.subr.mxu0 0.0
      %659 = vmatpush1.msra.mxu0 %v623
      %660 = vmatprep.subr.mxu0 0.0
      %661 = vmatpush1.msra.mxu0 %v624
      %662 = vmatprep.subr.mxu0 0.0
      %663 = vmatpush1.msra.mxu0 %v625
      %664 = vmatprep.subr.mxu0 0.0
      %665 = vmatpush1.msra.mxu0 %v626
      %666 = vmatprep.subr.mxu0 0.0
      %667 = vmatpush1.msra.mxu0 0.0
      %668 = vmatprep.subr.mxu0 0.0
      %669 = vmatpush1.msra.mxu0 0.0
      %670 = vmatprep.subr.mxu0 0.0
      %671 = vmatpush1.msra.mxu0 0.0
      %672 = vmatprep.subr.mxu0 0.0
      %673 = vmatpush1.msra.mxu0 0.0
      %674 = vmatprep.subr.mxu0 0.0
      %675 = vmatpush1.msra.mxu0 0.0
      %676 = vmatprep.subr.mxu0 0.0
      %677 = vmatpush1.msra.mxu0 0.0
      %678 = vmatprep.subr.mxu0 0.0
      %679 = vmatpush1.msra.mxu0 0.0
      %680 = vmatprep.subr.mxu0 0.0
      %681 = vmatpush1.msra.mxu0 0.0
      %682 = vmatprep.subr.mxu0 0.0
      %683 = vmatpush1.msra.mxu0 0.0
      %684 = vmatprep.subr.mxu0 0.0
      %685 = vmatpush1.msra.mxu0 0.0
      %686 = vmatprep.subr.mxu0 0.0
      %687 = vmatpush1.msra.mxu0 0.0
      %688 = vmatprep.subr.mxu0 0.0
      %689 = vmatpush1.msra.mxu0 0.0
      %690 = vmatprep.subr.mxu0 0.0
      %691 = vmatpush1.msra.mxu0 0.0
      %692 = vmatprep.subr.mxu0 0.0
      %693 = vmatpush1.msra.mxu0 0.0
      %694 = vmatprep.subr.mxu0 0.0
      %695 = vmatpush1.msra.mxu0 0.0
      %696 = vmatprep.subr.mxu0 0.0
      %697 = vmatpush1.msra.mxu0 0.0
      %698 = vmatprep.mubr.f32.mxu0 0.0
      %699 = vmatmul.mubr.f32.gmra.mrb[0].mxu0 %v610
      %v700 = vpop.f32.mrb[0].mxu0
      %v701 = vadd.f32 %v632, %v700
      %v702 = vpop.f32.mrb[0].mxu0
      %703 = vdwg.mxu0
      %704 = vst [vmem:[#allocation10] sm:$0xff] %v701
    $region53: #{symbolic_encoder.1} parent=1 // pred_fallthru
      _
    // Predicated region
    $region54: #{symbolic_encoder.1} parent=1 // pred_check
      _
    $region55: #{symbolic_encoder.1} parent=1 // pred_check_branch
      %706 = sbr.rel (0) target = $region57
    $region56: #{symbolic_encoder.1} parent=1 // pred_region
      %s708 = ssub.s32 128, 128
      %709 = vsyncadd [#allocation4], %s708
      %s711 = sshll.u32 [#allocation10], 4
      %s712 = int_to_ptr.vmem [resolvable:$true] %s711
      %714 = dma.vmem_to_hbm [thread:$0]  %s712, 128, %s7, [#allocation4]
    $region57: #{symbolic_encoder.1} parent=1 // pred_fallthru
      _
    // Predicated region
    $region58: #{symbolic_encoder.1} parent=1 // pred_check
      _
    $region59: #{symbolic_encoder.1} parent=1 // pred_check_branch
      %716 = sbr.rel (0) target = $region61
    $region60: #{symbolic_encoder.1} parent=1 // pred_region
      %717 = dma.done [#allocation4], 128
    $region61: #{symbolic_encoder.1} parent=1 // pred_fallthru
      _
    %718 = vsyncpa [#allocation3], 1
    %719 = vsyncpa [#allocation6], 1
    %720 = vsyncpa [#allocation9], 1
    %721 = vsyncpa [#allocation4], 1

</llo_original>
